<compile_context>
chip_gen: v7x
topology: tpu7x:2x2x1
jax: 0.10.0
libtpu: 0.0.40
codegen_flags: <defaults>
</compile_context>

<pallas_src>
import functools

import jax
import jax.numpy as jnp
from jax.experimental import pallas as pl
from jax.experimental.pallas import tpu as pltpu


def _round_up(a, b):
    return (a + b - 1) // b * b


def _matmul_stats_kernel(x_ref, w_ref, sum_ref, ssq_ref, *, tm, m_rows):
    # Phase 1: y = x @ W (MXU, f32 accumulate); per-tile partial channel stats.
    y = jnp.dot(x_ref[...], w_ref[...], preferred_element_type=jnp.float32)
    if m_rows % tm != 0:
        # Ragged last tile: rows >= m_rows contain garbage (no XLA-side pad),
        # keep them out of the statistics.
        row = jax.lax.broadcasted_iota(jnp.int32, y.shape, 0) + pl.program_id(0) * tm
        y = jnp.where(row < m_rows, y, 0.0)
    s = jnp.sum(y, axis=0, keepdims=True)
    q = jnp.sum(y * y, axis=0, keepdims=True)
    # Each grid step owns its own (1, 8, C) partial row -> no resident
    # accumulator, so the row axis can be "parallel" (both v7x TensorCores).
    sum_ref[0] = jnp.broadcast_to(s, sum_ref.shape[1:])
    ssq_ref[0] = jnp.broadcast_to(q, ssq_ref.shape[1:])


def _matmul_bn_kernel(x_ref, w_ref, scale_ref, shift_ref, o_ref, *, use_relu):
    # Phase 2: recompute y = x @ W and fuse BatchNorm as one FMA (+ optional ReLU).
    y = jnp.dot(x_ref[...], w_ref[...], preferred_element_type=jnp.float32)
    out = y * scale_ref[...] + shift_ref[...]
    if use_relu:
        out = jnp.maximum(out, 0.0)
    o_ref[...] = out.astype(o_ref.dtype)


def linear_encoder(x, weight_t, bias, gamma, beta, *, eps=1e-6, use_relu=False):
    """LinearEncoder forward.

    x: [..., Cin]; weight_t: [Cin, Cout] (transposed nn.Linear weight);
    bias/gamma/beta: [Cout].

    `bias` is accepted for interface parity with nn.Linear but unused:
    training-mode BatchNorm subtracts the per-channel batch mean, which cancels
    any constant per-channel bias exactly.
    """
    del bias
    orig_shape = x.shape
    cin = orig_shape[-1]
    cout = weight_t.shape[1]
    x2d = x.reshape(-1, cin)  # metadata-only reshape, no HBM pass
    m = x2d.shape[0]
    f32 = jnp.float32

    xb = jnp.dtype(x.dtype).itemsize
    wb = jnp.dtype(weight_t.dtype).itemsize

    # Per-generation sizing: v7x has 64 MiB VMEM, v5e/v6e have 128 MiB.
    try:
        vmem_cap = int(pltpu.get_tpu_info().vmem_capacity_bytes)
    except Exception:
        vmem_cap = 64 * 1024 * 1024
    big_vmem = vmem_cap >= 96 * 1024 * 1024
    budget = (24 if big_vmem else 12) * 1024 * 1024
    tm_cap = 2048 if big_vmem else 1024
    vmem_limit = min(vmem_cap // 2, 64 * 1024 * 1024)

    # Per-row VMEM cost (worst phase): double-buffered x tile, double-buffered
    # output tile, transient f32 y tile.  Fixed cost: double-buffered W block.
    fixed = 2 * cin * cout * wb + 8 * cout * 4 + 64 * 1024
    row_bytes = 2 * cin * xb + 2 * cout * xb + cout * 4
    tm = (budget - fixed) // max(row_bytes, 1)
    tm = max(8, min(tm_cap, (tm // 8) * 8, _round_up(m, 8)))
    n_tiles = pl.cdiv(m, tm)

    cparams = pltpu.CompilerParams(
        dimension_semantics=("parallel",), vmem_limit_bytes=vmem_limit)

    # --- Phase 1: tiled matmul -> per-tile partial sum / sum-of-squares ---
    sum_part, ssq_part = pl.pallas_call(
        functools.partial(_matmul_stats_kernel, tm=tm, m_rows=m),
        out_shape=(
            jax.ShapeDtypeStruct((n_tiles, 8, cout), f32),
            jax.ShapeDtypeStruct((n_tiles, 8, cout), f32),
        ),
        grid_spec=pl.GridSpec(
            grid=(n_tiles,),
            in_specs=[
                pl.BlockSpec((tm, cin), lambda i: (i, 0)),
                pl.BlockSpec((cin, cout), lambda i: (0, 0)),
            ],
            out_specs=(
                pl.BlockSpec((1, 8, cout), lambda i: (i, 0, 0)),
                pl.BlockSpec((1, 8, cout), lambda i: (i, 0, 0)),
            ),
        ),
        compiler_params=cparams,
    )(x2d, weight_t)

    # Tiny XLA reduction + fold of BN parameters into a single scale/shift.
    ysum = jnp.sum(sum_part[:, 0, :], axis=0)
    yssq = jnp.sum(ssq_part[:, 0, :], axis=0)
    inv_m = 1.0 / m
    mean = ysum * inv_m
    # Single-pass (E[y^2] - E[y]^2) in f32; clamped at 0.  (Shifted/two-pass
    # formulation would be safer if |mean| >> std per channel.)
    var = jnp.maximum(yssq * inv_m - mean * mean, 0.0)
    scale = gamma.astype(f32) * jax.lax.rsqrt(var + float(eps))
    shift = beta.astype(f32) - mean * scale
    scale = scale.reshape(1, cout)
    shift = shift.reshape(1, cout)

    # --- Phase 2: recompute y tile + fused normalize (+ ReLU) ---
    out2d = pl.pallas_call(
        functools.partial(_matmul_bn_kernel, use_relu=use_relu),
        out_shape=jax.ShapeDtypeStruct((m, cout), x.dtype),
        grid_spec=pl.GridSpec(
            grid=(n_tiles,),
            in_specs=[
                pl.BlockSpec((tm, cin), lambda i: (i, 0)),
                pl.BlockSpec((cin, cout), lambda i: (0, 0)),
                pl.BlockSpec((1, cout), lambda i: (0, 0)),
                pl.BlockSpec((1, cout), lambda i: (0, 0)),
            ],
            out_specs=pl.BlockSpec((tm, cout), lambda i: (i, 0)),
        ),
        compiler_params=cparams,
    )(x2d, weight_t, scale, shift)

    return out2d.reshape(orig_shape[:-1] + (cout,))


def _reference(x, weight_t, bias, gamma, beta, eps=1e-6, use_relu=False):
    # Faithful PyTorch semantics: Linear (with bias) -> train-mode BatchNorm1d
    # (biased variance, eps inside rsqrt) -> optional ReLU.
    y = x.reshape(-1, x.shape[-1]).astype(jnp.float32) @ weight_t.astype(jnp.float32) + bias
    mean = jnp.mean(y, axis=0, keepdims=True)
    var = jnp.mean((y - mean) ** 2, axis=0, keepdims=True)
    out = (y - mean) * jax.lax.rsqrt(var + eps) * gamma + beta
    if use_relu:
        out = jnp.maximum(out, 0.0)
    return out.reshape(x.shape[:-1] + (weight_t.shape[1],)).astype(x.dtype)


if __name__ == "__main__":
    # Small shapes consistent with the module: batch=2, seq=8, in_channel=32, emb_dim=64.
    in_channel, out_channel = 32, 64
    key = jax.random.PRNGKey(0)
    kx, kw, kb, kg, kbe = jax.random.split(key, 5)

    x = jax.random.normal(kx, (2, 8, in_channel), dtype=jnp.float32)

    # PyTorch stores nn.Linear weight as (out, in); we keep the transposed (in, out) form.
    weight_t = jax.random.normal(kw, (in_channel, out_channel), dtype=jnp.float32) * (
        1.0 / jnp.sqrt(in_channel)
    )
    bias = jax.random.normal(kb, (out_channel,), dtype=jnp.float32) * 0.1
    gamma = 1.0 + 0.1 * jax.random.normal(kg, (out_channel,), dtype=jnp.float32)
    beta = 0.1 * jax.random.normal(kbe, (out_channel,), dtype=jnp.float32)

    # act=None (GNN_encoder's encoder default) and act=ReLU.
    for use_relu in (False, True):
        out = linear_encoder(x, weight_t, bias, gamma, beta, use_relu=use_relu)
        out = jax.block_until_ready(out)
        ref = _reference(x, weight_t, bias, gamma, beta, use_relu=use_relu)
        assert out.shape == (2, 8, out_channel)
        assert jnp.allclose(out, ref, atol=1e-4, rtol=1e-4), float(jnp.max(jnp.abs(out - ref)))

    print("KERNEL_OK")
</pallas_src>

<mosaic_0001>
module attributes {stable_mosaic.version = 11 : i64} {
  func.func @_matmul_stats_kernel(%arg0: i32, %arg1: memref<16x32xf32, #tpu.memory_space<vmem>>, %arg2: memref<32x64xf32, #tpu.memory_space<vmem>>, %arg3: memref<1x8x64xf32, #tpu.memory_space<vmem>>, %arg4: memref<1x8x64xf32, #tpu.memory_space<vmem>>) attributes {dimension_semantics = [#tpu.dimension_semantics<parallel>], iteration_bounds = array<i64: 1>, scalar_prefetch = 0 : i64, scratch_operands = 0 : i64, tpu.core_type = #tpu.core_type<tc>, window_params = [{transform_indices = @transform_0, window_bounds = array<i64: 16, 32>}, {pipeline_mode = #tpu.pipeline_mode<synchronous>, transform_indices = @transform_1, window_bounds = array<i64: 32, 64>}, {transform_indices = @transform_2, window_bounds = array<i64: 1, 8, 64>}, {transform_indices = @transform_3, window_bounds = array<i64: 1, 8, 64>}]} {
    %c0 = arith.constant 0 : index
    %c0_0 = arith.constant 0 : index
    %0 = vector.load %arg1[%c0, %c0_0] : memref<16x32xf32, #tpu.memory_space<vmem>>, vector<16x32xf32>
    %c0_1 = arith.constant 0 : index
    %c0_2 = arith.constant 0 : index
    %1 = vector.load %arg2[%c0_1, %c0_2] : memref<32x64xf32, #tpu.memory_space<vmem>>, vector<32x64xf32>
    %cst = arith.constant dense<0.000000e+00> : vector<16x64xf32>
    %2 = tpu.matmul %0, %1, %cst {dimension_numbers = #tpu.dot_dimension_numbers<[1], [0], [0], [1], [0, 0, 1, 1], [], []>} : vector<16x32xf32>, vector<32x64xf32>, vector<16x64xf32> -> vector<16x64xf32>
    %cst_3 = arith.constant dense<0.000000e+00> : vector<64xf32>
    %3 = vector.multi_reduction <add>, %2, %cst_3 [0] : vector<16x64xf32> to vector<64xf32>
    %4 = vector.shape_cast %3 : vector<64xf32> to vector<1x64xf32>
    %5 = arith.mulf %2, %2 : vector<16x64xf32>
    %cst_4 = arith.constant dense<0.000000e+00> : vector<64xf32>
    %6 = vector.multi_reduction <add>, %5, %cst_4 [0] : vector<16x64xf32> to vector<64xf32>
    %7 = vector.shape_cast %6 : vector<64xf32> to vector<1x64xf32>
    %8 = vector.shape_cast %4 : vector<1x64xf32> to vector<1x64xf32>
    %9 = vector.broadcast %8 : vector<1x64xf32> to vector<8x64xf32>
    %c0_5 = arith.constant 0 : index
    %c0_6 = arith.constant 0 : index
    %c0_7 = arith.constant 0 : index
    %10 = vector.load %arg3[%c0_5, %c0_6, %c0_7] : memref<1x8x64xf32, #tpu.memory_space<vmem>>, vector<1x8x64xf32>
    %11 = vector.shape_cast %10 : vector<1x8x64xf32> to vector<8x64xf32>
    %12 = vector.shape_cast %9 : vector<8x64xf32> to vector<1x8x64xf32>
    tpu.vector_store %arg3[%c0_5, %c0_6, %c0_7], %12 {strides = array<i32>} : memref<1x8x64xf32, #tpu.memory_space<vmem>>, vector<1x8x64xf32>,
    %13 = vector.shape_cast %7 : vector<1x64xf32> to vector<1x64xf32>
    %14 = vector.broadcast %13 : vector<1x64xf32> to vector<8x64xf32>
    %c0_8 = arith.constant 0 : index
    %c0_9 = arith.constant 0 : index
    %c0_10 = arith.constant 0 : index
    %15 = vector.load %arg4[%c0_8, %c0_9, %c0_10] : memref<1x8x64xf32, #tpu.memory_space<vmem>>, vector<1x8x64xf32>
    %16 = vector.shape_cast %15 : vector<1x8x64xf32> to vector<8x64xf32>
    %17 = vector.shape_cast %14 : vector<8x64xf32> to vector<1x8x64xf32>
    tpu.vector_store %arg4[%c0_8, %c0_9, %c0_10], %17 {strides = array<i32>} : memref<1x8x64xf32, #tpu.memory_space<vmem>>, vector<1x8x64xf32>,
    return
  }
  func.func @transform_0(%arg0: i32) -> (i32, i32) {
    %c0_i32 = arith.constant 0 : i32
    %c0_i32_0 = arith.constant 0 : i32
    return %arg0, %c0_i32 : i32, i32
  }
  func.func @transform_1(%arg0: i32) -> (i32, i32) {
    %c0_i32 = arith.constant 0 : i32
    %c0_i32_0 = arith.constant 0 : i32
    %c0_i32_1 = arith.constant 0 : i32
    return %c0_i32, %c0_i32_0 : i32, i32
  }
  func.func @transform_2(%arg0: i32) -> (i32, i32, i32) {
    %c0_i32 = arith.constant 0 : i32
    %c0_i32_0 = arith.constant 0 : i32
    %c0_i32_1 = arith.constant 0 : i32
    return %arg0, %c0_i32, %c0_i32_0 : i32, i32, i32
  }
  func.func @transform_3(%arg0: i32) -> (i32, i32, i32) {
    %c0_i32 = arith.constant 0 : i32
    %c0_i32_0 = arith.constant 0 : i32
    %c0_i32_1 = arith.constant 0 : i32
    return %arg0, %c0_i32, %c0_i32_0 : i32, i32, i32
  }
}

</mosaic_0001>

<llo_original>
// kernel: tpu_custom_call.1
$region0: #{tpu_custom_call.1}
  #allocation0 [shape = 'u32[]', space=smem, size = 0x4, offset = 0x4, fixed_abs, tag = 'smem constant byte address 0x4 - core index']
  #allocation1 [shape = 'u32[144,128]{1,0:T(1,128)}', space=vmem, size = 0x12000, scoped, tag = 'internal scratch']
  %s0 = inlined_call_operand.hbm [shape: f32[16,32], index: 0, kind: input, shape index: {}]
  %s1 = inlined_call_operand.hbm [shape: f32[32,64], index: 1, kind: input, shape index: {}]
  %s2 = inlined_call_operand.hbm [shape: f32[1,8,64], index: 2, kind: output, shape index: {0}]
  %s3 = inlined_call_operand.hbm [shape: f32[1,8,64], index: 3, kind: output, shape index: {1}]
  %4 = xla_tuple %s2, %s3
  %s5 = sld [smem:[#allocation0]]
  $region34: #{tpu_custom_call.1} parent=0
    _
  %s7 = ssub.s32 1, %s5
  %s8 = scalar_select 0, %s7, %s5
  $region1: #{tpu_custom_call.1} parent=0
    #allocation2 [shape = 'u8[8192]{0}', space=vmem, size = 0x2000, scoped, tag = 'input window, operand 0, single buffered']
    #allocation3 [shape = 's32[1]{0}', space=sflag, size = 0x4, scoped, tag = 'scoped memory for tpu_custom_call.1']
    #allocation4 [shape = 's32[1]{0}', space=sflag, size = 0x4, scoped, tag = 'scoped memory for tpu_custom_call.1']
    #allocation5 [shape = 'u8[16384]{0}', space=vmem, size = 0x4000, scoped, tag = 'input window, operand 1, single buffered']
    #allocation6 [shape = 's32[1]{0}', space=sflag, size = 0x4, scoped, tag = 'scoped memory for tpu_custom_call.1']
    #allocation7 [shape = 'u8[4096]{0}', space=vmem, size = 0x1000, scoped, tag = 'output window, operand 0, single buffered']
    #allocation8 [shape = 'u8[4096]{0}', space=vmem, size = 0x1000, scoped, tag = 'output window, operand 1, single buffered']
    #allocation9 [shape = 's32[1]{0}', space=sflag, size = 0x4, scoped, tag = 'scoped memory for tpu_custom_call.1']
    %9 = vsyncpa [#allocation3], 0
    %10 = vsyncpa [#allocation6], 0
    %11 = vsyncpa [#allocation4], 0
    %12 = vsyncpa [#allocation9], 0
    // Predicated region
    $region2: #{tpu_custom_call.1} parent=1 // pred_check
      _
    $region3: #{tpu_custom_call.1} parent=1 // pred_check_branch
      %14 = sbr.rel (0) target = $region5
    $region4: #{tpu_custom_call.1} parent=1 // pred_region
      %s16 = ssub.s32 256, 256
      %17 = vsyncadd [#allocation3], %s16
      %s18 = sshll.u32 [#allocation2], 4
      %s19 = int_to_ptr.vmem [resolvable:$true] %s18
      %24 = dma.hbm_to_vmem [thread:$0]  %s0, 256, %s19, [#allocation3], 128, 128, 8
    $region5: #{tpu_custom_call.1} parent=1 // pred_fallthru
      _
    // Predicated region
    $region6: #{tpu_custom_call.1} parent=1 // pred_check
      _
    $region7: #{tpu_custom_call.1} parent=1 // pred_check_branch
      %26 = sbr.rel (0) target = $region9
    $region8: #{tpu_custom_call.1} parent=1 // pred_region
      %s28 = ssub.s32 512, 512
      %29 = vsyncadd [#allocation6], %s28
      %s30 = sshll.u32 [#allocation5], 4
      %s31 = int_to_ptr.vmem [resolvable:$true] %s30
      %36 = dma.hbm_to_vmem [thread:$0]  %s1, 512, %s31, [#allocation6], 128, 128, 8
    $region9: #{tpu_custom_call.1} parent=1 // pred_fallthru
      _
    // Predicated region
    $region10: #{tpu_custom_call.1} parent=1 // pred_check
      _
    $region11: #{tpu_custom_call.1} parent=1 // pred_check_branch
      %38 = sbr.rel (0) target = $region13
    $region12: #{tpu_custom_call.1} parent=1 // pred_region
      %39 = dma.done [#allocation3], 256
    $region13: #{tpu_custom_call.1} parent=1 // pred_fallthru
      _
    // Predicated region
    $region14: #{tpu_custom_call.1} parent=1 // pred_check
      _
    $region15: #{tpu_custom_call.1} parent=1 // pred_check_branch
      %41 = sbr.rel (0) target = $region17
    $region16: #{tpu_custom_call.1} parent=1 // pred_region
      %42 = dma.done [#allocation6], 512
    $region17: #{tpu_custom_call.1} parent=1 // pred_fallthru
      _
    %v43 = vld [vmem:[#allocation2] sm:$0xff]
    %v44 = vld [vmem:[#allocation2 + $0x8] sm:$0xff]
    %v45 = vld [vmem:[#allocation5] sm:$0xff]
    %v46 = vld [vmem:[#allocation5 + $0x8] sm:$0xff]
    %v47 = vld [vmem:[#allocation5 + $0x10] sm:$0xff]
    %v48 = vld [vmem:[#allocation5 + $0x18] sm:$0xff]
    %vm49 = vcmask 261120
    %v51 = vsel %vm49, %v43, 0
    %v54 = vsel %vm49, %v44, 0
    %56 = vmatprep.subr.mxu0 0.0
    %57 = vmatpush1.msra.mxu0 %v45
    %58 = vmatprep.subr.mxu0 0.0
    %59 = vmatpush1.msra.mxu0 %v46
    %60 = vmatprep.subr.mxu0 0.0
    %61 = vmatpush1.msra.mxu0 %v47
    %62 = vmatprep.subr.mxu0 0.0
    %63 = vmatpush1.msra.mxu0 %v48
    %64 = vmatprep.subr.mxu0 0.0
    %65 = vmatpush1.msra.mxu0 0.0
    %66 = vmatprep.subr.mxu0 0.0
    %67 = vmatpush1.msra.mxu0 0.0
    %68 = vmatprep.subr.mxu0 0.0
    %69 = vmatpush1.msra.mxu0 0.0
    %70 = vmatprep.subr.mxu0 0.0
    %71 = vmatpush1.msra.mxu0 0.0
    %72 = vmatprep.subr.mxu0 0.0
    %73 = vmatpush1.msra.mxu0 0.0
    %74 = vmatprep.subr.mxu0 0.0
    %75 = vmatpush1.msra.mxu0 0.0
    %76 = vmatprep.subr.mxu0 0.0
    %77 = vmatpush1.msra.mxu0 0.0
    %78 = vmatprep.subr.mxu0 0.0
    %79 = vmatpush1.msra.mxu0 0.0
    %80 = vmatprep.subr.mxu0 0.0
    %81 = vmatpush1.msra.mxu0 0.0
    %82 = vmatprep.subr.mxu0 0.0
    %83 = vmatpush1.msra.mxu0 0.0
    %84 = vmatprep.subr.mxu0 0.0
    %85 = vmatpush1.msra.mxu0 0.0
    %86 = vmatprep.subr.mxu0 0.0
    %87 = vmatpush1.msra.mxu0 0.0
    %88 = vmatprep.subr.mxu0 0.0
    %89 = vmatpush1.msra.mxu0 0.0
    %90 = vmatprep.subr.mxu0 0.0
    %91 = vmatpush1.msra.mxu0 0.0
    %92 = vmatprep.subr.mxu0 0.0
    %93 = vmatpush1.msra.mxu0 0.0
    %94 = vmatprep.subr.mxu0 0.0
    %95 = vmatpush1.msra.mxu0 0.0
    %96 = vmatprep.subr.mxu0 0.0
    %97 = vmatpush1.msra.mxu0 0.0
    %98 = vmatprep.subr.mxu0 0.0
    %99 = vmatpush1.msra.mxu0 0.0
    %100 = vmatprep.subr.mxu0 0.0
    %101 = vmatpush1.msra.mxu0 0.0
    %102 = vmatprep.subr.mxu0 0.0
    %103 = vmatpush1.msra.mxu0 0.0
    %104 = vmatprep.subr.mxu0 0.0
    %105 = vmatpush1.msra.mxu0 0.0
    %106 = vmatprep.subr.mxu0 0.0
    %107 = vmatpush1.msra.mxu0 0.0
    %108 = vmatprep.subr.mxu0 0.0
    %109 = vmatpush1.msra.mxu0 0.0
    %110 = vmatprep.subr.mxu0 0.0
    %111 = vmatpush1.msra.mxu0 0.0
    %112 = vmatprep.subr.mxu0 0.0
    %113 = vmatpush1.msra.mxu0 0.0
    %114 = vmatprep.subr.mxu0 0.0
    %115 = vmatpush1.msra.mxu0 0.0
    %116 = vmatprep.subr.mxu0 0.0
    %117 = vmatpush1.msra.mxu0 0.0
    %118 = vmatprep.subr.mxu0 0.0
    %119 = vmatpush1.msra.mxu0 0.0
    %120 = vmatprep.mubr.f32.mxu0 0.0
    %121 = vmatmul.mubr.f32.gmra.mrb[0].mxu0 %v51
    %v122 = vpop.f32.mrb[0].mxu0
    %v123 = vadd.f32 0.0, %v122
    %v124 = vpop.f32.mrb[0].mxu0
    %125 = vmatprep.mubr.f32.mxu0 0.0
    %126 = vmatmul.mubr.f32.gmra.mrb[0].mxu0 %v54
    %v127 = vpop.f32.mrb[0].mxu0
    %v128 = vadd.f32 0.0, %v127
    %v129 = vpop.f32.mrb[0].mxu0
    %130 = vdwg.mxu0
    %vm131 = vcmask 523264
    %v132 = vsel %vm131, %v123, 0.0
    %v133 = vsel %vm131, %v128, 0.0
    %v134 = vadd.f32 %v132, %v133
    %v135 = vrot.slane %v134, 4
    %v136 = vadd.f32 %v134, %v135
    %v137 = vrot.slane %v136, 2
    %v138 = vadd.f32 %v136, %v137
    %v139 = vrot.slane %v138, 1
    %v140 = vadd.f32 %v138, %v139
    %v141 = vmul.f32 %v123, %v123
    %v142 = vmul.f32 %v128, %v128
    %v143 = vsel %vm131, %v141, 0.0
    %v144 = vsel %vm131, %v142, 0.0
    %v145 = vadd.f32 %v143, %v144
    %v146 = vrot.slane %v145, 4
    %v147 = vadd.f32 %v145, %v146
    %v148 = vrot.slane %v147, 2
    %v149 = vadd.f32 %v147, %v148
    %v150 = vrot.slane %v149, 1
    %v151 = vadd.f32 %v149, %v150
    %152 = vst.msk [vmem:[#allocation7] sm:$0xff] %vm131, %v140
    %153 = vst.msk [vmem:[#allocation8] sm:$0xff] %vm131, %v151
    // Predicated region
    $region18: #{tpu_custom_call.1} parent=1 // pred_check
      _
    $region19: #{tpu_custom_call.1} parent=1 // pred_check_branch
      %155 = sbr.rel (0) target = $region21
    $region20: #{tpu_custom_call.1} parent=1 // pred_region
      %s157 = ssub.s32 128, 128
      %158 = vsyncadd [#allocation4], %s157
      %s160 = sshll.u32 [#allocation7], 4
      %s161 = int_to_ptr.vmem [resolvable:$true] %s160
      %163 = dma.vmem_to_hbm [thread:$0]  %s161, 128, %s2, [#allocation4]
    $region21: #{tpu_custom_call.1} parent=1 // pred_fallthru
      _
    // Predicated region
    $region22: #{tpu_custom_call.1} parent=1 // pred_check
      _
    $region23: #{tpu_custom_call.1} parent=1 // pred_check_branch
      %165 = sbr.rel (0) target = $region25
    $region24: #{tpu_custom_call.1} parent=1 // pred_region
      %s167 = ssub.s32 128, 128
      %168 = vsyncadd [#allocation9], %s167
      %s170 = sshll.u32 [#allocation8], 4
      %s171 = int_to_ptr.vmem [resolvable:$true] %s170
      %173 = dma.vmem_to_hbm [thread:$0]  %s171, 128, %s3, [#allocation9]
    $region25: #{tpu_custom_call.1} parent=1 // pred_fallthru
      _
    // Predicated region
    $region26: #{tpu_custom_call.1} parent=1 // pred_check
      _
    $region27: #{tpu_custom_call.1} parent=1 // pred_check_branch
      %175 = sbr.rel (0) target = $region29
    $region28: #{tpu_custom_call.1} parent=1 // pred_region
      %176 = dma.done [#allocation4], 128
    $region29: #{tpu_custom_call.1} parent=1 // pred_fallthru
      _
    // Predicated region
    $region30: #{tpu_custom_call.1} parent=1 // pred_check
      _
    $region31: #{tpu_custom_call.1} parent=1 // pred_check_branch
      %178 = sbr.rel (0) target = $region33
    $region32: #{tpu_custom_call.1} parent=1 // pred_region
      %179 = dma.done [#allocation9], 128
    $region33: #{tpu_custom_call.1} parent=1 // pred_fallthru
      _
    %180 = vsyncpa [#allocation3], 1
    %181 = vsyncpa [#allocation6], 1
    %182 = vsyncpa [#allocation4], 1
    %183 = vsyncpa [#allocation9], 1

</llo_original>
